<compile_context>
chip_gen: v5e
topology: v5e:2x2
jax: 0.10.0
libtpu: 0.0.40
codegen_flags: <defaults>
</compile_context>

<pallas_src>
import jax
import jax.numpy as jnp
from jax.experimental import pallas as pl
from jax.experimental.pallas import tpu as pltpu

LANES = 128
SUBLANES = 8
CHUNK = SUBLANES * LANES          # 1024: flat elements per (8, 128) f32 vreg
TARGET_TILE_R = 4096              # rows/block -> (4096, 128) f32 = 2 MiB/block


def _make_mse_kernel(tile_r, tiles_per_slice, num_tiles, num_slices, rows):
    """Build the reduction kernel with all sizing baked in statically."""
    ragged_last = (rows % tile_r) != 0                        # last block partial
    uneven_split = (tiles_per_slice * num_slices) != num_tiles
    last_rows = rows - (num_tiles - 1) * tile_r               # rows in last tile

    def _accumulate(x_ref, t_ref, acc_ref, nrows):
        # Static prefix slice of the ref view (zero runtime cost); nrows is a
        # multiple of 8, so the (nrows,128)->(nrows//8,8,128) reshape is
        # vreg-aligned and the leading-axis sum lowers to VPU adds (no XLU).
        d = (x_ref[:nrows, :].astype(jnp.float32)
             - t_ref[:nrows, :].astype(jnp.float32))
        acc_ref[...] += (d * d).reshape(nrows // SUBLANES, SUBLANES, LANES).sum(axis=0)

    def kernel(x_ref, t_ref, o_ref, acc_ref):
        k = pl.program_id(1)

        @pl.when(k == 0)
        def _init():
            acc_ref[...] = jnp.zeros_like(acc_ref)

        if not (ragged_last or uneven_split):
            # Common path: every (slice, step) maps to a full, in-range tile.
            _accumulate(x_ref, t_ref, acc_ref, tile_r)
        else:
            tile = pl.program_id(0) * tiles_per_slice + k
            num_full = num_tiles - 1 if ragged_last else num_tiles

            @pl.when(tile < num_full)
            def _full():
                _accumulate(x_ref, t_ref, acc_ref, tile_r)

            if ragged_last:
                @pl.when(tile == num_tiles - 1)
                def _tail():
                    _accumulate(x_ref, t_ref, acc_ref, last_rows)
            # Steps with tile >= num_tiles (clamped duplicates of an uneven
            # slice split) contribute nothing.

        @pl.when(k == pl.num_programs(1) - 1)
        def _finalize():
            o_ref[0, 0] = jnp.sum(acc_ref[...])

    return kernel


@jax.jit
def _mse_loss_pallas(x, target):
    """mean((x - target)**2) over all elements via a Pallas streaming reduce."""
    assert x.shape == target.shape, (x.shape, target.shape)
    n = x.size
    xf = x.reshape(-1)
    tf = target.reshape(-1)

    total = jnp.float32(0.0)
    n_aligned = (n // CHUNK) * CHUNK            # static

    if n_aligned:
        rows = n_aligned // LANES               # multiple of 8
        x2 = xf[:n_aligned].reshape(rows, LANES)
        t2 = tf[:n_aligned].reshape(rows, LANES)

        tile_r = min(TARGET_TILE_R, rows)       # multiple of 8, <= rows
        num_tiles = pl.cdiv(rows, tile_r)
        num_slices = 2 if num_tiles >= 2 else 1   # split tiles across 2 TCs (v7x)
        tiles_per_slice = pl.cdiv(num_tiles, num_slices)
        uneven_split = (tiles_per_slice * num_slices) != num_tiles

        kernel = _make_mse_kernel(tile_r, tiles_per_slice, num_tiles,
                                  num_slices, rows)

        if uneven_split:
            # Clamp so the extra step(s) of the last slice never index past the
            # final block; their contribution is skipped in-kernel.
            def in_map(p, k):
                return (jnp.minimum(p * tiles_per_slice + k, num_tiles - 1), 0)
        else:
            def in_map(p, k):                    # trivially affine
                return (p * tiles_per_slice + k, 0)

        cost = pl.CostEstimate(
            flops=3 * n_aligned,
            transcendentals=0,
            bytes_accessed=(n_aligned * (x.dtype.itemsize + target.dtype.itemsize)
                            + num_slices * 4),
        )

        # TODO(synk): on v7x, verify the leading "parallel" axis really shards
        # across both TensorCores; if a profile shows single-TC streaming,
        # switch it to pltpu.CORE_PARALLEL (keep the reduction axis "arbitrary").
        partials = pl.pallas_call(
            kernel,
            out_shape=jax.ShapeDtypeStruct((num_slices, 1), jnp.float32),
            grid_spec=pltpu.PrefetchScalarGridSpec(
                num_scalar_prefetch=0,
                grid=(num_slices, tiles_per_slice),
                in_specs=[
                    pl.BlockSpec((tile_r, LANES), in_map),
                    pl.BlockSpec((tile_r, LANES), in_map),
                ],
                out_specs=pl.BlockSpec(
                    (1, 1), lambda p, k: (p, 0), memory_space=pltpu.SMEM
                ),
                scratch_shapes=[pltpu.VMEM((SUBLANES, LANES), jnp.float32)],
            ),
            compiler_params=pltpu.CompilerParams(
                dimension_semantics=("parallel", "arbitrary")
            ),
            cost_estimate=cost,
        )(x2, t2)
        total = total + jnp.sum(partials)

    if n_aligned != n:
        # <1024-element ragged tail finished in plain JAX (avoids a full-array
        # pad/copy of both tensors just to make the flat size vreg-aligned).
        xt = xf[n_aligned:].astype(jnp.float32)
        tt = tf[n_aligned:].astype(jnp.float32)
        total = total + jnp.sum((xt - tt) ** 2)

    return total / jnp.float32(n)


class ContentLoss:
    """JAX/Pallas port of the PyTorch ContentLoss module.

    forward(x) computes self.loss = mse_loss(x, target) via a Pallas reduction
    kernel and returns `x` unchanged (identity pass-through), matching the
    PyTorch module semantics.
    """

    def __init__(self, target):
        self.target = jax.lax.stop_gradient(target)   # .detach()
        self.loss = None

    def forward(self, x):
        self.loss = _mse_loss_pallas(x, self.target)
        return x

    __call__ = forward


if __name__ == "__main__":
    def check(shape, key, rtol):
        k_in, k_tgt = jax.random.split(key)
        x = jax.random.normal(k_in, shape, dtype=jnp.float32)
        t = jax.random.normal(k_tgt, shape, dtype=jnp.float32)
        module = ContentLoss(t)
        out = jax.block_until_ready(module(x))
        loss = jax.block_until_ready(module.loss)
        ref = jnp.mean((x - t) ** 2)
        assert jnp.allclose(loss, ref, rtol=rtol, atol=1e-6), (shape, loss, ref)
        assert jnp.array_equal(out, x)

    # Primary small NCHW feature-map case (aligned flat size, single tile).
    check((2, 4, 16, 16), jax.random.PRNGKey(0), rtol=1e-5)
    # Ragged flat size: <1024-element tail handled in plain JAX, single tile.
    check((4, 64, 37, 53), jax.random.PRNGKey(1), rtol=1e-5)
    # Multi-tile: 2 slices, uneven 3-tile split, partial last block + JAX tail.
    check((8, 64, 45, 57), jax.random.PRNGKey(2), rtol=1e-4)

    print("KERNEL_OK")
</pallas_src>

<mosaic_0001>
module attributes {stable_mosaic.version = 11 : i64} {
  func.func @kernel(%arg0: i32, %arg1: i32, %arg2: memref<16x128xf32, #tpu.memory_space<vmem>>, %arg3: memref<16x128xf32, #tpu.memory_space<vmem>>, %arg4: memref<1x1xf32, #tpu.memory_space<smem>>, %arg5: memref<8x128xf32, #tpu.memory_space<vmem>>) attributes {dimension_semantics = [#tpu.dimension_semantics<parallel>, #tpu.dimension_semantics<arbitrary>], iteration_bounds = array<i64: 1, 1>, scalar_prefetch = 0 : i64, scratch_operands = 1 : i64, tpu.core_type = #tpu.core_type<tc>, window_params = [{transform_indices = @transform_0, window_bounds = array<i64: 16, 128>}, {transform_indices = @transform_1, window_bounds = array<i64: 16, 128>}, {transform_indices = @transform_2, window_bounds = array<i64: 1, 1>}]} {
    %c0_i32 = arith.constant 0 : i32
    %0 = arith.cmpi eq, %arg1, %c0_i32 : i32
    %1 = arith.extui %0 : i1 to i32
    %c0_i32_0 = arith.constant 0 : i32
    %2 = arith.cmpi ne, %1, %c0_i32_0 : i32
    scf.if %2 {
      %cst_10 = arith.constant 0.000000e+00 : f32
      %15 = vector.broadcast %cst_10 : f32 to vector<8x128xf32>
      %c0_11 = arith.constant 0 : index
      %c0_12 = arith.constant 0 : index
      %16 = vector.load %arg5[%c0_11, %c0_12] : memref<8x128xf32, #tpu.memory_space<vmem>>, vector<8x128xf32>
      tpu.vector_store %arg5[%c0_11, %c0_12], %15 {strides = array<i32>} : memref<8x128xf32, #tpu.memory_space<vmem>>, vector<8x128xf32>,
    } else {
    }
    %c0 = arith.constant 0 : index
    %c0_1 = arith.constant 0 : index
    %3 = vector.load %arg2[%c0, %c0_1] : memref<16x128xf32, #tpu.memory_space<vmem>>, vector<16x128xf32>
    %c0_2 = arith.constant 0 : index
    %c0_3 = arith.constant 0 : index
    %4 = vector.load %arg3[%c0_2, %c0_3] : memref<16x128xf32, #tpu.memory_space<vmem>>, vector<16x128xf32>
    %5 = arith.subf %3, %4 : vector<16x128xf32>
    %c0_4 = arith.constant 0 : index
    %c0_5 = arith.constant 0 : index
    %6 = vector.load %arg5[%c0_4, %c0_5] : memref<8x128xf32, #tpu.memory_space<vmem>>, vector<8x128xf32>
    %7 = arith.mulf %5, %5 : vector<16x128xf32>
    %8 = vector.shape_cast %7 : vector<16x128xf32> to vector<2x8x128xf32>
    %cst = arith.constant dense<0.000000e+00> : vector<8x128xf32>
    %9 = vector.multi_reduction <add>, %8, %cst [0] : vector<2x8x128xf32> to vector<8x128xf32>
    %10 = arith.addf %6, %9 : vector<8x128xf32>
    %c0_6 = arith.constant 0 : index
    %c0_7 = arith.constant 0 : index
    %11 = vector.load %arg5[%c0_6, %c0_7] : memref<8x128xf32, #tpu.memory_space<vmem>>, vector<8x128xf32>
    tpu.vector_store %arg5[%c0_6, %c0_7], %10 {strides = array<i32>} : memref<8x128xf32, #tpu.memory_space<vmem>>, vector<8x128xf32>,
    %c0_i32_8 = arith.constant 0 : i32
    %12 = arith.cmpi eq, %arg1, %c0_i32_8 : i32
    %13 = arith.extui %12 : i1 to i32
    %c0_i32_9 = arith.constant 0 : i32
    %14 = arith.cmpi ne, %13, %c0_i32_9 : i32
    scf.if %14 {
      %c0_10 = arith.constant 0 : index
      %c0_11 = arith.constant 0 : index
      %15 = vector.load %arg5[%c0_10, %c0_11] : memref<8x128xf32, #tpu.memory_space<vmem>>, vector<8x128xf32>
      %16 = vector.shape_cast %15 : vector<8x128xf32> to vector<1x8x128xf32>
      %cst_12 = arith.constant dense<0.000000e+00> : vector<1xf32>
      %17 = vector.multi_reduction <add>, %16, %cst_12 [1, 2] : vector<1x8x128xf32> to vector<1xf32>
      %18 = vector.shape_cast %17 : vector<1xf32> to vector<1x1x1xf32>
      %19 = vector.extract %18[0, 0, 0] : f32 from vector<1x1x1xf32>
      %c0_13 = arith.constant 0 : index
      %c0_14 = arith.constant 0 : index
      %20 = memref.load %arg4[%c0_13, %c0_14] : memref<1x1xf32, #tpu.memory_space<smem>>
      memref.store %19, %arg4[%c0_13, %c0_14] : memref<1x1xf32, #tpu.memory_space<smem>>
    } else {
    }
    return
  }
  func.func @transform_0(%arg0: i32, %arg1: i32) -> (i32, i32) {
    %c1_i32 = arith.constant 1 : i32
    %0 = arith.muli %arg0, %c1_i32 : i32
    %1 = arith.addi %0, %arg1 : i32
    %c0_i32 = arith.constant 0 : i32
    %c0_i32_0 = arith.constant 0 : i32
    return %1, %c0_i32 : i32, i32
  }
  func.func @transform_1(%arg0: i32, %arg1: i32) -> (i32, i32) {
    %c1_i32 = arith.constant 1 : i32
    %0 = arith.muli %arg0, %c1_i32 : i32
    %1 = arith.addi %0, %arg1 : i32
    %c0_i32 = arith.constant 0 : i32
    %c0_i32_0 = arith.constant 0 : i32
    return %1, %c0_i32 : i32, i32
  }
  func.func @transform_2(%arg0: i32, %arg1: i32) -> (i32, i32) {
    %c0_i32 = arith.constant 0 : i32
    %c0_i32_0 = arith.constant 0 : i32
    return %arg0, %c0_i32 : i32, i32
  }
}

</mosaic_0001>

<llo_original>
// kernel: _mse_loss_pallas.1
$region0: #{_mse_loss_pallas.1}
  #allocation0 [shape = 'u32[]', space=smem, size = 0x4, offset = 0x4, fixed_abs, tag = 'smem constant byte address 0x4 - core index']
  #allocation1 [shape = 'u32[72,128]{1,0:T(1,128)}', space=vmem, size = 0x9000, scoped, tag = 'internal scratch']
  #allocation2 [shape = 'f32[8,128]{1,0:T(8,128)}', space=vmem, size = 0x1000, scoped, tag = 'scratch operand']
  %s0 = inlined_call_operand.vmem [shape: f32[16,128], index: 0, kind: input, shape index: {}]
  %s1 = inlined_call_operand.vmem [shape: f32[16,128], index: 1, kind: input, shape index: {}]
  %s2 = inlined_call_operand.hbm [shape: f32[1,1], index: 2, kind: output, shape index: {}]
  %s3 = sld [smem:[#allocation0]]
  $region26: #{_mse_loss_pallas.1} parent=0
    _
  %s5 = ssub.s32 1, %s3
  %s6 = scalar_select 0, %s5, %s3
  $region1: #{_mse_loss_pallas.1} parent=0
    #allocation3 [shape = 'u8[512]{0}', space=smem, size = 0x200, scoped, tag = 'output window, operand 0, single buffered']
    #allocation4 [shape = 's32[1]{0}', space=sflag, size = 0x4, scoped, tag = 'scoped memory for _mse_loss_pallas.1']
    %7 = vsyncpa [#allocation4], 0
    // Predicated region
    $region2: #{_mse_loss_pallas.1} parent=1 // pred_check
      _
    $region3: #{_mse_loss_pallas.1} parent=1 // pred_check_branch
      %9 = sbr.rel (0) target = $region5
    $region4: #{_mse_loss_pallas.1} parent=1 // pred_region
      %s10 = sadd.s32 0, 0
      %s11 = smul.u32 2, %s10
      %p12 = scmp.lt.s32.totalorder %s11, 1
      %s13 = scalar_select %p12, %s11, 1
      %s14 = smul.addr %s13, 8
      %s15 = scalar_lea.vmem %s0, %s14
      %s16 = sadd.s32 0, 0
      %s17 = smul.u32 2, %s16
    $region5: #{_mse_loss_pallas.1} parent=1 // pred_fallthru
      _
    // Predicated region
    $region6: #{_mse_loss_pallas.1} parent=1 // pred_check
      _
    $region7: #{_mse_loss_pallas.1} parent=1 // pred_check_branch
      %19 = sbr.rel (0) target = $region9
    $region8: #{_mse_loss_pallas.1} parent=1 // pred_region
      %s20 = sadd.s32 0, 0
      %s21 = smul.u32 2, %s20
      %p22 = scmp.lt.s32.totalorder %s21, 1
      %s23 = scalar_select %p22, %s21, 1
      %s24 = smul.addr %s23, 8
      %s25 = scalar_lea.vmem %s1, %s24
      %s26 = sadd.s32 0, 0
      %s27 = smul.u32 2, %s26
    $region9: #{_mse_loss_pallas.1} parent=1 // pred_fallthru
      _
    %s28 = sadd.s32 0, 0
    %s29 = smul.u32 2, %s28
    %p30 = scmp.lt.s32.totalorder %s29, 1
    %s31 = scalar_select %p30, %s29, 1
    %s32 = smul.addr %s31, 8
    %s33 = scalar_lea.vmem %s0, %s32
    %s34 = sadd.s32 0, 0
    %s35 = smul.u32 2, %s34
    %p36 = scmp.lt.s32.totalorder %s35, 1
    %s37 = scalar_select %p36, %s35, 1
    %s38 = smul.addr %s37, 8
    %s39 = scalar_lea.vmem %s1, %s38
    %s40 = sadd.s32 0, 0
    %s41 = smul.u32 2, %s40
    %p42 = scmp.lt.s32.totalorder %s41, 1
    %s43 = scalar_select %p42, %s41, 1
    %s44 = smul.addr %s43, 8
    %s45 = scalar_lea.vmem %s0, %s44
    %s46 = sadd.s32 0, 0
    %s47 = smul.u32 2, %s46
    %s48 = sadd.s32 0, 0
    %s49 = smul.u32 2, %s48
    %p50 = scmp.lt.s32.totalorder %s49, 1
    %s51 = scalar_select %p50, %s49, 1
    %s52 = smul.addr %s51, 8
    %s53 = scalar_lea.vmem %s1, %s52
    %s54 = sadd.s32 0, 0
    %s55 = smul.u32 2, %s54
    %p56 = scmp.eq.s32.totalorder 0, 0
    // Predicated region
    $region10: #{_mse_loss_pallas.1} parent=1 // pred_check
      %p57 = pneg %p56
    $region11: #{_mse_loss_pallas.1} parent=1 // pred_check_branch
      %59 = sbr.rel (%p57) target = $region13
    $region12: #{_mse_loss_pallas.1} parent=1 // pred_region
      %60 = vst [vmem:[#allocation2] sm:$0xff] 0.0
    $region13: #{_mse_loss_pallas.1} parent=1 // pred_fallthru
      _
    %v61 = vld [vmem:[%s45] sm:$0xff]
    %v62 = vld [vmem:[%s45 + $0x8] sm:$0xff]
    %v63 = vld [vmem:[%s53] sm:$0xff]
    %v64 = vld [vmem:[%s53 + $0x8] sm:$0xff]
    %v65 = vsub.f32 %v61, %v63
    %v66 = vsub.f32 %v62, %v64
    %v67 = vld [vmem:[#allocation2] sm:$0xff]
    %v68 = vmul.f32 %v65, %v65
    %v69 = vmul.f32 %v66, %v66
    %v70 = vadd.f32 %v68, %v69
    %v71 = vadd.f32 %v67, %v70
    %72 = vst [vmem:[#allocation2] sm:$0xff] %v71
    // Predicated region
    $region14: #{_mse_loss_pallas.1} parent=1 // pred_check
      %p73 = pneg %p56
    $region15: #{_mse_loss_pallas.1} parent=1 // pred_check_branch
      %75 = sbr.rel (%p73) target = $region17
    $region16: #{_mse_loss_pallas.1} parent=1 // pred_region
      %v76 = vld [vmem:[#allocation2] sm:$0xff]
      %77 = vadd.xlane.f32.xlu0 %v76
      %v78 = vpop.xlane.xlu0 %77
      %v79 = vrot.slane %v78, 4
      %v80 = vadd.f32 %v78, %v79
      %v81 = vrot.slane %v80, 2
      %v82 = vadd.f32 %v80, %v81
      %v83 = vrot.slane %v82, 1
      %v84 = vadd.f32 %v82, %v83
      %s85 = vtos %v84
      %s86 = scalar_lea.smem [#allocation3], 0
      %87 = sst [smem:[%s86]] %s85
    $region17: #{_mse_loss_pallas.1} parent=1 // pred_fallthru
      _
    // Predicated region
    $region18: #{_mse_loss_pallas.1} parent=1 // pred_check
      _
    $region19: #{_mse_loss_pallas.1} parent=1 // pred_check_branch
      %89 = sbr.rel (0) target = $region21
    $region20: #{_mse_loss_pallas.1} parent=1 // pred_region
      %91 = vsyncadd [#allocation4], 0
      %s93 = sshll.u32 %s2, 4
      %s94 = int_to_ptr.hbm [resolvable:$true] %s93
      %96 = dma.smem_to_hbm [#allocation3], 16, %s94, [#allocation4]
    $region21: #{_mse_loss_pallas.1} parent=1 // pred_fallthru
      _
    // Predicated region
    $region22: #{_mse_loss_pallas.1} parent=1 // pred_check
      _
    $region23: #{_mse_loss_pallas.1} parent=1 // pred_check_branch
      %98 = sbr.rel (0) target = $region25
    $region24: #{_mse_loss_pallas.1} parent=1 // pred_region
      %100 = dma.done [#allocation4], 16
    $region25: #{_mse_loss_pallas.1} parent=1 // pred_fallthru
      _
    %101 = sfence
    %102 = vsyncpa [#allocation4], 1

</llo_original>
